<compile_context>
chip_gen: v5e
topology: v5e:2x2
jax: 0.10.0
libtpu: 0.0.40
codegen_flags: <defaults>
</compile_context>

<pallas_src>
import jax
import jax.numpy as jnp
from jax.experimental import pallas as pl
from jax.experimental.pallas import tpu as pltpu

# torchkit's nn_.delta constant (small shrink factor applied to tanh output)
DELTA = 1e-6
_LANE = 128
_SUBLANE = 8


def _round_up(x, m):
    return ((x + m - 1) // m) * m


def _binary_linear_kernel(x_ref, w_ref, col_ref, bias_ref, o_ref):
    """Grid = (M tiles, N tiles, K tiles); K (reduction) is the last axis.

    The f32 output block index is independent of k, so the block stays
    resident across the K axis and is used directly as the accumulator.
    """
    k = pl.program_id(2)

    @pl.when(k == 0)
    def _():
        o_ref[...] = jnp.zeros_like(o_ref)

    # [TM, TK] @ [TK, TN] -> f32 accumulate on the MXU, straight into o_ref.
    o_ref[...] += jnp.dot(x_ref[...], w_ref[...],
                          preferred_element_type=jnp.float32)

    @pl.when(k == pl.num_programs(2) - 1)
    def _():
        # Fused epilogue (in place): weight-norm column scale and bias (both
        # already divided by temperature), tanh, and the (1 - delta) shrink.
        y = o_ref[...] * col_ref[...] + bias_ref[...]
        o_ref[...] = jnp.tanh(y) * (1.0 - DELTA)


def prepare_binary_linear_params(direction, scale, bias,
                                 matmul_dtype=jnp.bfloat16,
                                 tn=1024, tk=1024):
    """One-time weight packing (call at module init, NOT per forward).

    direction: [D2, D1], scale: [D2], bias: [D2].
    """
    D2, D1 = direction.shape
    f32 = jnp.float32
    direction = direction.astype(f32)

    # Weight norm fused into a per-output-column scale. Full-D1 reduction done
    # once here, so any K tiling in the kernel stays correct.
    # NOTE: an all-zero direction row yields inf/NaN, same as the reference.
    col = scale.reshape(-1).astype(f32) * jax.lax.rsqrt(
        jnp.sum(direction * direction, axis=1))                    # [D2]

    TN = min(tn, _round_up(D2, _LANE))
    TK = min(tk, _round_up(D1, _LANE))
    N = _round_up(D2, TN)
    K = _round_up(D1, TK)

    # Pre-transposed to [K, N]: the MXU contracts on the RHS sublane axis and
    # the output lane axis is N (lane-dense stores). Zero padding keeps padded
    # rows/cols inert because col/bias are zero-padded too.
    w_p = jnp.zeros((K, N), matmul_dtype).at[:D1, :D2].set(
        direction.T.astype(matmul_dtype))
    col_p = jnp.zeros((1, N), f32).at[0, :D2].set(col)
    bias_p = jnp.zeros((1, N), f32).at[0, :D2].set(
        bias.reshape(-1).astype(f32))

    return dict(w=w_p, col=col_p, bias=bias_p,
                D1=D1, D2=D2, K=K, N=N, TN=TN, TK=TK,
                matmul_dtype=matmul_dtype)


def binary_linear_forward(params, x, temperature=1.0, tm=256):
    """Hot path. x: [B, D1] -> [B, D2] (f32)."""
    B, D1 = x.shape
    assert D1 == params["D1"], "input feature dim mismatch"
    f32 = jnp.float32
    mdt = params["matmul_dtype"]
    D2, K, N, TK, TN = (params["D2"], params["K"], params["N"],
                        params["TK"], params["TN"])

    TM = min(tm, _round_up(B, _SUBLANE))
    M = _round_up(B, TM)

    # v7x megacore: when M//TM == 1 and N//TN == 1, halve TN (if it stays a
    # multiple of 128 and still divides N) so the parallel N axis has >= 2
    # programs and both TensorCores get work. No effect on single-TC chips.
    if M // TM == 1 and N // TN == 1 and TN % (2 * _LANE) == 0:
        TN //= 2

    # Per-call temperature fold: tiny [1, N] ops only. Traced jnp math, so a
    # jit-traced temperature works (no float() concretization).
    inv_t = jnp.asarray(1.0, f32) / jnp.asarray(temperature, f32)
    col_p = params["col"] * inv_t
    bias_p = params["bias"] * inv_t

    # Skip the activation pad/cast copies when shapes/dtype already line up.
    if x.shape == (M, K) and x.dtype == mdt:
        x_p = x
    elif x.shape == (M, K):
        x_p = x.astype(mdt)
    else:
        x_p = jnp.zeros((M, K), mdt).at[:B, :D1].set(x.astype(mdt))

    grid = (M // TM, N // TN, K // TK)
    itemsize = jnp.dtype(mdt).itemsize

    # VMEM footprint: double-buffered x / weight tiles + double-buffered f32
    # output block (+ tiny col/bias). Cap the scoped limit at 48 MiB so the
    # same tiling also fits v7x's 64 MiB physical VMEM.
    vmem_bytes = (2 * (TM * TK + TK * TN) * itemsize
                  + 2 * TM * TN * 4 + 4 * TN * 4)
    vmem_limit = int(min(48 * 1024 * 1024,
                         max(32 * 1024 * 1024, int(vmem_bytes * 1.5))))

    out = pl.pallas_call(
        _binary_linear_kernel,
        out_shape=jax.ShapeDtypeStruct((M, N), f32),
        grid_spec=pltpu.PrefetchScalarGridSpec(
            num_scalar_prefetch=0,
            grid=grid,
            in_specs=[
                pl.BlockSpec((TM, TK), lambda i, j, k: (i, k)),   # x
                pl.BlockSpec((TK, TN), lambda i, j, k: (k, j)),   # direction^T
                pl.BlockSpec((1, TN), lambda i, j, k: (0, j)),    # col scale
                pl.BlockSpec((1, TN), lambda i, j, k: (0, j)),    # bias
            ],
            out_specs=pl.BlockSpec((TM, TN), lambda i, j, k: (i, j)),
        ),
        compiler_params=pltpu.CompilerParams(
            dimension_semantics=("parallel", "parallel", "arbitrary"),
            vmem_limit_bytes=vmem_limit,
        ),
        cost_estimate=pl.CostEstimate(
            flops=2 * M * N * K,
            transcendentals=M * N,
            bytes_accessed=(M * K + K * N) * itemsize + M * N * 4,
        ),
    )(x_p, params["w"], col_p, bias_p)

    # Skip the slice copy when no padding was added.
    if (M, N) == (B, D2):
        return out
    return out[:B, :D2]


def binary_linear_reference(x, direction, scale, bias, temperature=1.0):
    norm = jnp.sqrt(jnp.sum(direction * direction, axis=1, keepdims=True))
    w = scale[:, None] * direction / norm
    y = x @ w.T + bias[None, :]
    return jnp.tanh(y / temperature) * (1.0 - DELTA)


if __name__ == "__main__":
    # Small deterministic setup consistent with the module: batch=8, dim1=32,
    # dim2=32 (padded internally to (8, 128)-aligned tiles).
    B, D1, D2 = 8, 32, 32
    key = jax.random.PRNGKey(0)
    kx, kd, ks, kb = jax.random.split(key, 4)

    x = jax.random.normal(kx, (B, D1), dtype=jnp.float32)
    direction = jax.random.normal(kd, (D2, D1), dtype=jnp.float32) * 0.1
    scale = jax.random.normal(ks, (D2,), dtype=jnp.float32) * 0.5 + 1.0
    bias = jax.random.normal(kb, (D2,), dtype=jnp.float32) * 0.01

    temperature = 0.7
    ref = binary_linear_reference(x, direction, scale, bias, temperature)

    # f32 matmul path: tight check against the reference.
    params_f32 = prepare_binary_linear_params(direction, scale, bias,
                                              matmul_dtype=jnp.float32)
    out_f32 = jax.block_until_ready(
        binary_linear_forward(params_f32, x, temperature))
    assert out_f32.shape == (B, D2)
    assert jnp.allclose(out_f32, ref, atol=1e-4, rtol=1e-4), "f32 mismatch"

    # bf16 matmul path (default, MXU-rate on v5e/v6e/v7x): loose check — the
    # tanh saturation makes the bf16 matmul benign but not bit-identical.
    params_bf16 = prepare_binary_linear_params(direction, scale, bias)
    out_bf16 = jax.block_until_ready(
        binary_linear_forward(params_bf16, x, temperature))
    assert out_bf16.shape == (B, D2)
    assert jnp.allclose(out_bf16, ref, atol=3e-2, rtol=3e-2), "bf16 mismatch"

    print("KERNEL_OK")
</pallas_src>

<mosaic_0001>
module attributes {stable_mosaic.version = 11 : i64} {
  func.func @_binary_linear_kernel(%arg0: i32, %arg1: i32, %arg2: i32, %arg3: memref<8x128xf32, #tpu.memory_space<vmem>>, %arg4: memref<128x128xf32, #tpu.memory_space<vmem>>, %arg5: memref<1x128xf32, #tpu.memory_space<vmem>>, %arg6: memref<1x128xf32, #tpu.memory_space<vmem>>, %arg7: memref<8x128xf32, #tpu.memory_space<vmem>>) attributes {dimension_semantics = [#tpu.dimension_semantics<parallel>, #tpu.dimension_semantics<parallel>, #tpu.dimension_semantics<arbitrary>], iteration_bounds = array<i64: 1, 1, 1>, scalar_prefetch = 0 : i64, scratch_operands = 0 : i64, tpu.core_type = #tpu.core_type<tc>, window_params = [{transform_indices = @transform_0, window_bounds = array<i64: 8, 128>}, {transform_indices = @transform_1, window_bounds = array<i64: 128, 128>}, {transform_indices = @transform_2, window_bounds = array<i64: 1, 128>}, {transform_indices = @transform_3, window_bounds = array<i64: 1, 128>}, {transform_indices = @transform_4, window_bounds = array<i64: 8, 128>}]} {
    %c0_i32 = arith.constant 0 : i32
    %0 = arith.cmpi eq, %arg2, %c0_i32 : i32
    %1 = arith.extui %0 : i1 to i32
    %c0_i32_0 = arith.constant 0 : i32
    %2 = arith.cmpi ne, %1, %c0_i32_0 : i32
    scf.if %2 {
      %cst_10 = arith.constant 0.000000e+00 : f32
      %12 = vector.broadcast %cst_10 : f32 to vector<8x128xf32>
      %c0_11 = arith.constant 0 : index
      %c0_12 = arith.constant 0 : index
      %13 = vector.load %arg7[%c0_11, %c0_12] : memref<8x128xf32, #tpu.memory_space<vmem>>, vector<8x128xf32>
      tpu.vector_store %arg7[%c0_11, %c0_12], %12 {strides = array<i32>} : memref<8x128xf32, #tpu.memory_space<vmem>>, vector<8x128xf32>,
    } else {
    }
    %c0 = arith.constant 0 : index
    %c0_1 = arith.constant 0 : index
    %3 = vector.load %arg7[%c0, %c0_1] : memref<8x128xf32, #tpu.memory_space<vmem>>, vector<8x128xf32>
    %c0_2 = arith.constant 0 : index
    %c0_3 = arith.constant 0 : index
    %4 = vector.load %arg3[%c0_2, %c0_3] : memref<8x128xf32, #tpu.memory_space<vmem>>, vector<8x128xf32>
    %c0_4 = arith.constant 0 : index
    %c0_5 = arith.constant 0 : index
    %5 = vector.load %arg4[%c0_4, %c0_5] : memref<128x128xf32, #tpu.memory_space<vmem>>, vector<128x128xf32>
    %cst = arith.constant dense<0.000000e+00> : vector<8x128xf32>
    %6 = tpu.matmul %4, %5, %cst {dimension_numbers = #tpu.dot_dimension_numbers<[1], [0], [0], [1], [0, 0, 1, 1], [], []>} : vector<8x128xf32>, vector<128x128xf32>, vector<8x128xf32> -> vector<8x128xf32>
    %7 = arith.addf %3, %6 : vector<8x128xf32>
    %c0_6 = arith.constant 0 : index
    %c0_7 = arith.constant 0 : index
    %8 = vector.load %arg7[%c0_6, %c0_7] : memref<8x128xf32, #tpu.memory_space<vmem>>, vector<8x128xf32>
    tpu.vector_store %arg7[%c0_6, %c0_7], %7 {strides = array<i32>} : memref<8x128xf32, #tpu.memory_space<vmem>>, vector<8x128xf32>,
    %c0_i32_8 = arith.constant 0 : i32
    %9 = arith.cmpi eq, %arg2, %c0_i32_8 : i32
    %10 = arith.extui %9 : i1 to i32
    %c0_i32_9 = arith.constant 0 : i32
    %11 = arith.cmpi ne, %10, %c0_i32_9 : i32
    scf.if %11 {
      %c0_10 = arith.constant 0 : index
      %c0_11 = arith.constant 0 : index
      %12 = vector.load %arg7[%c0_10, %c0_11] : memref<8x128xf32, #tpu.memory_space<vmem>>, vector<8x128xf32>
      %c0_12 = arith.constant 0 : index
      %c0_13 = arith.constant 0 : index
      %13 = vector.load %arg5[%c0_12, %c0_13] : memref<1x128xf32, #tpu.memory_space<vmem>>, vector<1x128xf32>
      %14 = vector.broadcast %13 : vector<1x128xf32> to vector<8x128xf32>
      %15 = arith.mulf %12, %14 : vector<8x128xf32>
      %c0_14 = arith.constant 0 : index
      %c0_15 = arith.constant 0 : index
      %16 = vector.load %arg6[%c0_14, %c0_15] : memref<1x128xf32, #tpu.memory_space<vmem>>, vector<1x128xf32>
      %17 = vector.broadcast %16 : vector<1x128xf32> to vector<8x128xf32>
      %18 = arith.addf %15, %17 : vector<8x128xf32>
      %19 = math.tanh %18 : vector<8x128xf32>
      %cst_16 = arith.constant 0.999998986 : f32
      %20 = vector.broadcast %cst_16 : f32 to vector<8x128xf32>
      %21 = arith.mulf %19, %20 : vector<8x128xf32>
      %c0_17 = arith.constant 0 : index
      %c0_18 = arith.constant 0 : index
      %22 = vector.load %arg7[%c0_17, %c0_18] : memref<8x128xf32, #tpu.memory_space<vmem>>, vector<8x128xf32>
      tpu.vector_store %arg7[%c0_17, %c0_18], %21 {strides = array<i32>} : memref<8x128xf32, #tpu.memory_space<vmem>>, vector<8x128xf32>,
    } else {
    }
    return
  }
  func.func @transform_0(%arg0: i32, %arg1: i32, %arg2: i32) -> (i32, i32) {
    %c0_i32 = arith.constant 0 : i32
    return %arg0, %arg2 : i32, i32
  }
  func.func @transform_1(%arg0: i32, %arg1: i32, %arg2: i32) -> (i32, i32) {
    %c0_i32 = arith.constant 0 : i32
    return %arg2, %arg1 : i32, i32
  }
  func.func @transform_2(%arg0: i32, %arg1: i32, %arg2: i32) -> (i32, i32) {
    %c0_i32 = arith.constant 0 : i32
    %c0_i32_0 = arith.constant 0 : i32
    return %c0_i32, %arg1 : i32, i32
  }
  func.func @transform_3(%arg0: i32, %arg1: i32, %arg2: i32) -> (i32, i32) {
    %c0_i32 = arith.constant 0 : i32
    %c0_i32_0 = arith.constant 0 : i32
    return %c0_i32, %arg1 : i32, i32
  }
  func.func @transform_4(%arg0: i32, %arg1: i32, %arg2: i32) -> (i32, i32) {
    %c0_i32 = arith.constant 0 : i32
    return %arg0, %arg1 : i32, i32
  }
}

</mosaic_0001>

<llo_original>
// kernel: tpu_custom_call.1
$region0: #{tpu_custom_call.1}
  #allocation0 [shape = 'u32[]', space=smem, size = 0x4, offset = 0x4, fixed_abs, tag = 'smem constant byte address 0x4 - core index']
  #allocation1 [shape = 'u32[72,128]{1,0:T(1,128)}', space=vmem, size = 0x9000, scoped, tag = 'internal scratch']
  %s0 = inlined_call_operand.hbm [shape: f32[8,128], index: 0, kind: input, shape index: {}]
  %s1 = inlined_call_operand.hbm [shape: f32[128,128], index: 1, kind: input, shape index: {}]
  %s2 = inlined_call_operand.vmem [shape: f32[1,128], index: 2, kind: input, shape index: {}]
  %s3 = inlined_call_operand.vmem [shape: f32[1,128], index: 3, kind: input, shape index: {}]
  %s4 = inlined_call_operand.hbm [shape: f32[8,128], index: 4, kind: output, shape index: {}]
  %s5 = sld [smem:[#allocation0]]
  $region42: #{tpu_custom_call.1} parent=0
    _
  %s7 = ssub.s32 1, %s5
  %s8 = scalar_select 0, %s7, %s5
  $region1: #{tpu_custom_call.1} parent=0
    #allocation2 [shape = 'u8[4096]{0}', space=vmem, size = 0x1000, scoped, tag = 'input window, operand 0, single buffered']
    #allocation3 [shape = 's32[1]{0}', space=sflag, size = 0x4, scoped, tag = 'scoped memory for tpu_custom_call.1']
    #allocation4 [shape = 's32[1]{0}', space=sflag, size = 0x4, scoped, tag = 'scoped memory for tpu_custom_call.1']
    #allocation5 [shape = 'u8[65536]{0}', space=vmem, size = 0x10000, scoped, tag = 'input window, operand 1, single buffered']
    #allocation6 [shape = 's32[1]{0}', space=sflag, size = 0x4, scoped, tag = 'scoped memory for tpu_custom_call.1']
    #allocation7 [shape = 'u8[4096]{0}', space=vmem, size = 0x1000, scoped, tag = 'output window, operand 0, single buffered']
    %9 = vsyncpa [#allocation3], 0
    %10 = vsyncpa [#allocation6], 0
    %11 = vsyncpa [#allocation4], 0
    // Predicated region
    $region2: #{tpu_custom_call.1} parent=1 // pred_check
      _
    $region3: #{tpu_custom_call.1} parent=1 // pred_check_branch
      %13 = sbr.rel (0) target = $region5
    $region4: #{tpu_custom_call.1} parent=1 // pred_region
      %15 = vsyncadd [#allocation3], 0
      %s17 = sshll.u32 %s0, 4
      %s18 = int_to_ptr.hbm [resolvable:$true] %s17
      %s19 = sshll.u32 [#allocation2], 4
      %s20 = int_to_ptr.vmem [resolvable:$true] %s19
      %22 = dma.hbm_to_vmem [thread:$0]  %s18, 128, %s20, [#allocation3]
    $region5: #{tpu_custom_call.1} parent=1 // pred_fallthru
      _
    // Predicated region
    $region6: #{tpu_custom_call.1} parent=1 // pred_check
      _
    $region7: #{tpu_custom_call.1} parent=1 // pred_check_branch
      %24 = sbr.rel (0) target = $region9
    $region8: #{tpu_custom_call.1} parent=1 // pred_region
      %26 = vsyncadd [#allocation6], 0
      %s27 = sshll.u32 %s1, 4
      %s28 = int_to_ptr.hbm [resolvable:$true] %s27
      %s29 = sshll.u32 [#allocation5], 4
      %s30 = int_to_ptr.vmem [resolvable:$true] %s29
      %35 = dma.hbm_to_vmem [thread:$0]  %s28, 2048, %s30, [#allocation6], 128, 128, 8
    $region9: #{tpu_custom_call.1} parent=1 // pred_fallthru
      _
    // Predicated region
    $region10: #{tpu_custom_call.1} parent=1 // pred_check
      _
    $region11: #{tpu_custom_call.1} parent=1 // pred_check_branch
      %37 = sbr.rel (0) target = $region13
    $region12: #{tpu_custom_call.1} parent=1 // pred_region
      _
    $region13: #{tpu_custom_call.1} parent=1 // pred_fallthru
      _
    // Predicated region
    $region14: #{tpu_custom_call.1} parent=1 // pred_check
      _
    $region15: #{tpu_custom_call.1} parent=1 // pred_check_branch
      %39 = sbr.rel (0) target = $region17
    $region16: #{tpu_custom_call.1} parent=1 // pred_region
      _
    $region17: #{tpu_custom_call.1} parent=1 // pred_fallthru
      _
    // Predicated region
    $region18: #{tpu_custom_call.1} parent=1 // pred_check
      _
    $region19: #{tpu_custom_call.1} parent=1 // pred_check_branch
      %41 = sbr.rel (0) target = $region21
    $region20: #{tpu_custom_call.1} parent=1 // pred_region
      %43 = dma.done [#allocation3], 128
    $region21: #{tpu_custom_call.1} parent=1 // pred_fallthru
      _
    // Predicated region
    $region22: #{tpu_custom_call.1} parent=1 // pred_check
      _
    $region23: #{tpu_custom_call.1} parent=1 // pred_check_branch
      %45 = sbr.rel (0) target = $region25
    $region24: #{tpu_custom_call.1} parent=1 // pred_region
      %47 = dma.done [#allocation6], 2048
    $region25: #{tpu_custom_call.1} parent=1 // pred_fallthru
      _
    %p48 = scmp.eq.s32.totalorder 0, 0
    // Predicated region
    $region26: #{tpu_custom_call.1} parent=1 // pred_check
      %p49 = pneg %p48
    $region27: #{tpu_custom_call.1} parent=1 // pred_check_branch
      %51 = sbr.rel (%p49) target = $region29
    $region28: #{tpu_custom_call.1} parent=1 // pred_region
      %52 = vst [vmem:[#allocation7] sm:$0xff] 0.0
    $region29: #{tpu_custom_call.1} parent=1 // pred_fallthru
      _
    %v53 = vld [vmem:[#allocation7] sm:$0xff]
    %v54 = vld [vmem:[#allocation2] sm:$0xff]
    %v55 = vld [vmem:[#allocation5] sm:$0xff]
    %v56 = vld [vmem:[#allocation5 + $0x8] sm:$0xff]
    %v57 = vld [vmem:[#allocation5 + $0x10] sm:$0xff]
    %v58 = vld [vmem:[#allocation5 + $0x18] sm:$0xff]
    %v59 = vld [vmem:[#allocation5 + $0x20] sm:$0xff]
    %v60 = vld [vmem:[#allocation5 + $0x28] sm:$0xff]
    %v61 = vld [vmem:[#allocation5 + $0x30] sm:$0xff]
    %v62 = vld [vmem:[#allocation5 + $0x38] sm:$0xff]
    %v63 = vld [vmem:[#allocation5 + $0x40] sm:$0xff]
    %v64 = vld [vmem:[#allocation5 + $0x48] sm:$0xff]
    %v65 = vld [vmem:[#allocation5 + $0x50] sm:$0xff]
    %v66 = vld [vmem:[#allocation5 + $0x58] sm:$0xff]
    %v67 = vld [vmem:[#allocation5 + $0x60] sm:$0xff]
    %v68 = vld [vmem:[#allocation5 + $0x68] sm:$0xff]
    %v69 = vld [vmem:[#allocation5 + $0x70] sm:$0xff]
    %v70 = vld [vmem:[#allocation5 + $0x78] sm:$0xff]
    %71 = vmatpush.msra.mxu0 %v70
    %72 = vmatpush.msra.mxu0 %v69
    %73 = vmatpush.msra.mxu0 %v68
    %74 = vmatpush.msra.mxu0 %v67
    %75 = vmatpush.msra.mxu0 %v66
    %76 = vmatpush.msra.mxu0 %v65
    %77 = vmatpush.msra.mxu0 %v64
    %78 = vmatpush.msra.mxu0 %v63
    %79 = vmatpush.msra.mxu0 %v62
    %80 = vmatpush.msra.mxu0 %v61
    %81 = vmatpush.msra.mxu0 %v60
    %82 = vmatpush.msra.mxu0 %v59
    %83 = vmatpush.msra.mxu0 %v58
    %84 = vmatpush.msra.mxu0 %v57
    %85 = vmatpush.msra.mxu0 %v56
    %86 = vmatpush.msra.mxu0 %v55
    %87 = vmatmul.f32.gmra.mxu0 %v54
    %v88 = vpop.f32.mrf.mxu0
    %v89 = vadd.f32 0.0, %v88
    %90 = vdwg.mxu0
    %v91 = vadd.f32 %v53, %v89
    %92 = vst [vmem:[#allocation7] sm:$0xff] %v91
    // Predicated region
    $region30: #{tpu_custom_call.1} parent=1 // pred_check
      %p93 = pneg %p48
    $region31: #{tpu_custom_call.1} parent=1 // pred_check_branch
      %95 = sbr.rel (%p93) target = $region33
    $region32: #{tpu_custom_call.1} parent=1 // pred_region
      %v96 = vld [vmem:[#allocation7] sm:$0xff]
      %v97 = vld [vmem:[%s2] sm:$0x1]
      %v99 = vperm.slane %v97, 0
      %v101 = vmul.f32 %v96, %v99
      %v102 = vld [vmem:[%s3] sm:$0x1]
      %v104 = vperm.slane %v102, 0
      %v106 = vadd.f32 %v101, %v104
      %v107 = vtanh.pop %v106
      %v108 = vmul.f32 %v107, 0.999999
      %109 = vst [vmem:[#allocation7] sm:$0xff] %v108
    $region33: #{tpu_custom_call.1} parent=1 // pred_fallthru
      _
    // Predicated region
    $region34: #{tpu_custom_call.1} parent=1 // pred_check
      _
    $region35: #{tpu_custom_call.1} parent=1 // pred_check_branch
      %111 = sbr.rel (0) target = $region37
    $region36: #{tpu_custom_call.1} parent=1 // pred_region
      %113 = vsyncadd [#allocation4], 0
      %s115 = sshll.u32 [#allocation7], 4
      %s116 = int_to_ptr.vmem [resolvable:$true] %s115
      %s117 = sshll.u32 %s4, 4
      %s118 = int_to_ptr.hbm [resolvable:$true] %s117
      %120 = dma.vmem_to_hbm [thread:$0]  %s116, 128, %s118, [#allocation4]
    $region37: #{tpu_custom_call.1} parent=1 // pred_fallthru
      _
    // Predicated region
    $region38: #{tpu_custom_call.1} parent=1 // pred_check
      _
    $region39: #{tpu_custom_call.1} parent=1 // pred_check_branch
      %122 = sbr.rel (0) target = $region41
    $region40: #{tpu_custom_call.1} parent=1 // pred_region
      %124 = dma.done [#allocation4], 128
    $region41: #{tpu_custom_call.1} parent=1 // pred_fallthru
      _
    %125 = vsyncpa [#allocation3], 1
    %126 = vsyncpa [#allocation6], 1
    %127 = vsyncpa [#allocation4], 1

</llo_original>
